<compile_context>
chip_gen: v7x
topology: tpu7x:2x2x1
jax: 0.10.0
libtpu: 0.0.40
codegen_flags: <defaults>
</compile_context>

<pallas_src>
import functools

import jax
import jax.numpy as jnp
from jax.experimental import pallas as pl
from jax.experimental.pallas import tpu as pltpu


def _label_smooth_kernel(pred_ref, tgt_ref, partial_ref, *, lb_pos, lb_neg, total_b):
    i = pl.program_id(0)
    x = pred_ref[...].astype(jnp.float32)               # (TB, C), f32 math on-chip
    tb, _ = x.shape

    # Row statistics for log-softmax (no full logp array materialized).
    m = jnp.max(x, axis=-1, keepdims=True)               # (TB, 1)
    lse = jnp.log(jnp.sum(jnp.exp(x - m), axis=-1, keepdims=True))

    # Fused smoothed-one-hot reduction: w = lb_pos at target col, lb_neg else.
    col = jax.lax.broadcasted_iota(jnp.int32, x.shape, 1)
    tgt = tgt_ref[...]                                    # (TB, 1) int32
    w = jnp.where(col == tgt, jnp.float32(lb_pos), jnp.float32(lb_neg))
    wx = jnp.sum(w * x, axis=-1, keepdims=True)           # (TB, 1)

    # per_row = -sum_c(w * (x - m - lse)) = (m + lse) - sum_c(w * x)  (sum w == 1)
    per_row = (m + lse) - wx

    # Zero padded rows on the remainder tile (pad data may be NaN / garbage).
    row = jax.lax.broadcasted_iota(jnp.int32, (tb, 1), 0)
    valid = (i * tb + row) < total_b
    per_row = jnp.where(valid, per_row, 0.0)

    partial_ref[...] = jnp.sum(per_row).reshape(1, 1, 1)


def label_smooth_loss(pred, target, n_class, alpha, *, block_b=None):
    """pred: (B, C) float (f32 or bf16), target: (B,) int -> scalar f32 loss."""
    B, C = pred.shape
    assert C == n_class
    lb_pos = 1.0 - alpha
    lb_neg = alpha / (n_class - 1)

    itemsize = pred.dtype.itemsize
    # Sublane packing: bf16 packs 16 rows per vreg, f32 packs 8.
    sublane = 16 if pred.dtype == jnp.bfloat16 else 8

    # Live VMEM per grid step ~= double-buffered input tile (2 x itemsize)
    # plus the materialized f32 upcast of the tile and one fused f32 temporary
    # of the same size (2 x 4 bytes). Target ~24 MiB of live working set.
    vmem_workset_target = 24 * 1024 * 1024
    bytes_per_row_live = C * (2 * itemsize + 2 * 4)
    rows_budget = max(sublane, vmem_workset_target // bytes_per_row_live)

    tb = rows_budget if block_b is None else max(1, min(block_b, rows_budget))
    if B > sublane:
        # Force grid >= 2 so the "parallel" batch axis actually splits across
        # both TensorCores on v7x (one extra ~0.35 us step on v5e/v6e: noise).
        half = -(-B // 2)                               # ceil(B / 2)
        half = -(-half // sublane) * sublane            # round up to sublane
        tb = min(tb, half)
        tb = max(sublane, (tb // sublane) * sublane)    # keep sublane alignment
    else:
        tb = B                                          # single full-extent tile
    grid = pl.cdiv(B, tb)

    # Scoped-VMEM request: actual need + headroom, never the full 64 MiB of a
    # v7x TensorCore; floor at 32 MiB (>= every generation's default scoped
    # limit, and above v5e's 16 MiB default which double-buffered tiles exceed).
    live_bytes = tb * C * (2 * itemsize + 2 * 4) + 256 * 1024
    vmem_limit = min(48 * 1024 * 1024, max(32 * 1024 * 1024, live_bytes + 8 * 1024 * 1024))

    tgt2d = target.astype(jnp.int32).reshape(B, 1)

    kernel = functools.partial(_label_smooth_kernel,
                               lb_pos=lb_pos, lb_neg=lb_neg, total_b=B)

    partials = pl.pallas_call(
        kernel,
        out_shape=jax.ShapeDtypeStruct((grid, 1, 1), jnp.float32),
        grid_spec=pltpu.PrefetchScalarGridSpec(
            num_scalar_prefetch=0,
            grid=(grid,),
            in_specs=[
                pl.BlockSpec((tb, C), lambda i: (i, 0)),   # pred batch tile
                pl.BlockSpec((tb, 1), lambda i: (i, 0)),   # target indices
            ],
            out_specs=pl.BlockSpec((1, 1, 1), lambda i: (i, 0, 0)),
        ),
        compiler_params=pltpu.CompilerParams(
            dimension_semantics=("parallel",),             # megacore on v7x
            vmem_limit_bytes=int(vmem_limit),
        ),
    )(pred, tgt2d)

    # Tiny final reduction in plain XLA (padded rows contributed exactly 0).
    return jnp.sum(partials) / jnp.float32(B)


if __name__ == "__main__":
    key = jax.random.PRNGKey(0)
    k1, k2 = jax.random.split(key)

    B, C = 24, 32          # batch, n_class (small test shapes)
    alpha = 0.1

    pred = jax.random.normal(k1, (B, C), dtype=jnp.float32)
    target = jax.random.randint(k2, (B,), 0, C, dtype=jnp.int32)

    def reference(p, t):
        logp = jax.nn.log_softmax(p.astype(jnp.float32), axis=-1)
        lb_pos = 1.0 - alpha
        lb_neg = alpha / (C - 1)
        onehot = jnp.full((B, C), lb_neg, jnp.float32).at[jnp.arange(B), t].set(lb_pos)
        return jnp.mean(-jnp.sum(onehot * logp, axis=-1))

    # f32 input; default sizing still yields grid=2 with a remainder tile,
    # exercising the pad-row mask.
    loss_f32 = jax.block_until_ready(
        label_smooth_loss(pred, target, n_class=C, alpha=alpha))
    ref_f32 = reference(pred, target)
    assert jnp.allclose(loss_f32, ref_f32, rtol=1e-5, atol=1e-5), (loss_f32, ref_f32)

    # Explicit small block_b path (forces the remainder-mask code again).
    loss_blk = jax.block_until_ready(
        label_smooth_loss(pred, target, n_class=C, alpha=alpha, block_b=16))
    assert jnp.allclose(loss_blk, ref_f32, rtol=1e-5, atol=1e-5), (loss_blk, ref_f32)

    # bf16 input straight from HBM; math stays f32 inside the kernel.
    pred_bf16 = pred.astype(jnp.bfloat16)
    loss_bf16 = jax.block_until_ready(
        label_smooth_loss(pred_bf16, target, n_class=C, alpha=alpha))
    ref_bf16 = reference(pred_bf16, target)
    assert jnp.allclose(loss_bf16, ref_bf16, rtol=1e-3, atol=1e-3), (loss_bf16, ref_bf16)

    print("KERNEL_OK")
</pallas_src>

<mosaic_0001>
module attributes {stable_mosaic.version = 11 : i64} {
  func.func @_label_smooth_kernel(%arg0: i32, %arg1: memref<16x32xf32, #tpu.memory_space<vmem>>, %arg2: memref<16x1xi32, #tpu.memory_space<vmem>>, %arg3: memref<1x1x1xf32, #tpu.memory_space<vmem>>) attributes {dimension_semantics = [#tpu.dimension_semantics<parallel>], iteration_bounds = array<i64: 2>, scalar_prefetch = 0 : i64, scratch_operands = 0 : i64, tpu.core_type = #tpu.core_type<tc>, window_params = [{transform_indices = @transform_0, window_bounds = array<i64: 16, 32>}, {transform_indices = @transform_1, window_bounds = array<i64: 16, 1>}, {transform_indices = @transform_2, window_bounds = array<i64: 1, 1, 1>}]} {
    %c0 = arith.constant 0 : index
    %c0_0 = arith.constant 0 : index
    %0 = vector.load %arg1[%c0, %c0_0] : memref<16x32xf32, #tpu.memory_space<vmem>>, vector<16x32xf32>
    %cst = arith.constant dense<0xFF800000> : vector<16xf32>
    %1 = vector.multi_reduction <maximumf>, %0, %cst [1] : vector<16x32xf32> to vector<16xf32>
    %2 = vector.shape_cast %1 : vector<16xf32> to vector<16x1xf32>
    %3 = vector.broadcast %2 : vector<16x1xf32> to vector<16x32xf32>
    %4 = arith.subf %0, %3 : vector<16x32xf32>
    %5 = math.exp %4 : vector<16x32xf32>
    %cst_1 = arith.constant dense<0.000000e+00> : vector<16xf32>
    %6 = vector.multi_reduction <add>, %5, %cst_1 [1] : vector<16x32xf32> to vector<16xf32>
    %7 = vector.shape_cast %6 : vector<16xf32> to vector<16x1xf32>
    %8 = math.log %7 : vector<16x1xf32>
    %9 = tpu.iota {dimensions = array<i32: 1>} : vector<16x32xi32>
    %c0_2 = arith.constant 0 : index
    %c0_3 = arith.constant 0 : index
    %10 = vector.load %arg2[%c0_2, %c0_3] : memref<16x1xi32, #tpu.memory_space<vmem>>, vector<16x1xi32>
    %11 = vector.broadcast %10 : vector<16x1xi32> to vector<16x32xi32>
    %12 = arith.cmpi eq, %9, %11 : vector<16x32xi32>
    %cst_4 = arith.constant 0.899999976 : f32
    %cst_5 = arith.constant 0.0032258064 : f32
    %13 = vector.broadcast %cst_4 : f32 to vector<16x32xf32>
    %14 = vector.broadcast %cst_5 : f32 to vector<16x32xf32>
    %15 = arith.select %12, %13, %14 : vector<16x32xi1>, vector<16x32xf32>
    %16 = arith.mulf %15, %0 : vector<16x32xf32>
    %cst_6 = arith.constant dense<0.000000e+00> : vector<16xf32>
    %17 = vector.multi_reduction <add>, %16, %cst_6 [1] : vector<16x32xf32> to vector<16xf32>
    %18 = vector.shape_cast %17 : vector<16xf32> to vector<16x1xf32>
    %19 = arith.addf %2, %8 : vector<16x1xf32>
    %20 = arith.subf %19, %18 : vector<16x1xf32>
    %21 = tpu.iota {dimensions = array<i32: 0>} : vector<16x1xi32>
    %c16_i32 = arith.constant 16 : i32
    %22 = arith.muli %arg0, %c16_i32 : i32
    %23 = vector.broadcast %22 : i32 to vector<16x1xi32>
    %24 = arith.addi %23, %21 : vector<16x1xi32>
    %c24_i32 = arith.constant 24 : i32
    %25 = vector.broadcast %c24_i32 : i32 to vector<16x1xi32>
    %26 = arith.cmpi slt, %24, %25 : vector<16x1xi32>
    %cst_7 = arith.constant 0.000000e+00 : f32
    %27 = vector.broadcast %cst_7 : f32 to vector<16x1xf32>
    %28 = arith.select %26, %20, %27 : vector<16x1xi1>, vector<16x1xf32>
    %29 = vector.shape_cast %28 : vector<16x1xf32> to vector<1x16x1xf32>
    %cst_8 = arith.constant dense<0.000000e+00> : vector<1xf32>
    %30 = vector.multi_reduction <add>, %29, %cst_8 [1, 2] : vector<1x16x1xf32> to vector<1xf32>
    %31 = vector.shape_cast %30 : vector<1xf32> to vector<1x1x1xf32>
    %32 = vector.extract %31[0, 0, 0] : f32 from vector<1x1x1xf32>
    %33 = vector.broadcast %32 : f32 to vector<1x1x1xf32>
    %c0_9 = arith.constant 0 : index
    %c0_10 = arith.constant 0 : index
    %c0_11 = arith.constant 0 : index
    %34 = vector.load %arg3[%c0_9, %c0_10, %c0_11] : memref<1x1x1xf32, #tpu.memory_space<vmem>>, vector<1x1x1xf32>
    tpu.vector_store %arg3[%c0_9, %c0_10, %c0_11], %33 {strides = array<i32>} : memref<1x1x1xf32, #tpu.memory_space<vmem>>, vector<1x1x1xf32>,
    return
  }
  func.func @transform_0(%arg0: i32) -> (i32, i32) {
    %c0_i32 = arith.constant 0 : i32
    %c0_i32_0 = arith.constant 0 : i32
    return %arg0, %c0_i32 : i32, i32
  }
  func.func @transform_1(%arg0: i32) -> (i32, i32) {
    %c0_i32 = arith.constant 0 : i32
    %c0_i32_0 = arith.constant 0 : i32
    return %arg0, %c0_i32 : i32, i32
  }
  func.func @transform_2(%arg0: i32) -> (i32, i32, i32) {
    %c0_i32 = arith.constant 0 : i32
    %c0_i32_0 = arith.constant 0 : i32
    %c0_i32_1 = arith.constant 0 : i32
    return %arg0, %c0_i32, %c0_i32_0 : i32, i32, i32
  }
}

</mosaic_0001>

<llo_original>
// kernel: tpu_custom_call.1
$region0: #{tpu_custom_call.1}
  #allocation0 [shape = 'u32[]', space=smem, size = 0x4, offset = 0x4, fixed_abs, tag = 'smem constant byte address 0x4 - core index']
  #allocation1 [shape = 'u32[144,128]{1,0:T(1,128)}', space=vmem, size = 0x12000, scoped, tag = 'internal scratch']
  %s0 = inlined_call_operand.vmem [shape: f32[24,32], index: 0, kind: input, shape index: {}]
  %s1 = inlined_call_operand.vmem [shape: s32[24,1], index: 1, kind: input, shape index: {}]
  %s2 = inlined_call_operand.vmem [shape: f32[2,1,1], index: 2, kind: output, shape index: {}]
  %s3 = sld [smem:[#allocation0]]
  $region41: #{tpu_custom_call.1} parent=0
    _
  %s5 = ssub.s32 1, %s3
  %s6 = scalar_select 0, %s5, %s3
  loop: start=0, step=1, limit=4
  $region2: #{tpu_custom_call.1} parent=0 // loop_pre_header
    _
  $region3: #{tpu_custom_call.1} parent=0 // loop_header
    %s8 = sphi 0, %s12
    %p9 = scmp.ge.s32.totalorder %s8, 4
    %s18 = sphi 0, %s20
    %s21 = sphi 0, %s18
    %s22 = sphi 0, %s21
    %s38 = sphi 0, %s22
    %s44 = sphi 0, %s46
    %s47 = sphi 0, %s44
    %s48 = sphi 0, %s47
    %s64 = sphi 0, %s48
    %s70 = sphi 0, %s72
    %s73 = sphi 0, %s70
    %s74 = sphi 0, %s73
    %s90 = sphi 0, %s74
  $region4: #{tpu_custom_call.1} parent=0 // loop_header_branch
    %11 = sbr.rel (%p9) target = $region8
  $region5: #{tpu_custom_call.1} parent=0 // loop_body
    %s13 = ssub.s32 %s8, 1
    %s14 = ssub.s32 %s8, 2
    %s15 = sadd.s32 %s8, 1
    %s16 = ssub.s32 %s8, %s15
    %p17 = scmp.eq.s32.totalorder %s16, 0
    %s19 = sadd.s32 %s18, 1
    %s20 = scalar_select %p17, %s18, %s19
    %p23 = pneg %p17
    %p24 = scmp.eq.s32.totalorder %s8, 1
    %p25 = por %p23, %p24
    %p26 = scmp.ne.s32.totalorder %s18, %s21
    %p27 = scmp.eq.s32.totalorder %s8, 0
    %p28 = por %p26, %p27
    %p29 = scmp.ne.s32.totalorder %s18, %s21
    %p30 = scmp.eq.s32.totalorder %s13, 1
    %p31 = por %p29, %p30
    %p32 = scmp.ne.s32.totalorder %s21, %s22
    %p33 = scmp.eq.s32.totalorder %s13, 0
    %p34 = por %p32, %p33
    %p35 = scmp.ne.s32.totalorder %s21, %s22
    %p36 = scmp.eq.s32.totalorder %s14, 1
    %p37 = por %p35, %p36
    %p39 = scmp.ne.s32.totalorder %s22, %s38
    %p40 = scmp.eq.s32.totalorder %s14, 0
    %p41 = por %p39, %p40
    %s42 = ssub.s32 %s8, %s15
    %p43 = scmp.eq.s32.totalorder %s42, 0
    %s45 = sadd.s32 %s44, 1
    %s46 = scalar_select %p43, %s44, %s45
    %p49 = pneg %p43
    %p50 = scmp.eq.s32.totalorder %s8, 1
    %p51 = por %p49, %p50
    %p52 = scmp.ne.s32.totalorder %s44, %s47
    %p53 = scmp.eq.s32.totalorder %s8, 0
    %p54 = por %p52, %p53
    %p55 = scmp.ne.s32.totalorder %s44, %s47
    %p56 = scmp.eq.s32.totalorder %s13, 1
    %p57 = por %p55, %p56
    %p58 = scmp.ne.s32.totalorder %s47, %s48
    %p59 = scmp.eq.s32.totalorder %s13, 0
    %p60 = por %p58, %p59
    %p61 = scmp.ne.s32.totalorder %s47, %s48
    %p62 = scmp.eq.s32.totalorder %s14, 1
    %p63 = por %p61, %p62
    %p65 = scmp.ne.s32.totalorder %s48, %s64
    %p66 = scmp.eq.s32.totalorder %s14, 0
    %p67 = por %p65, %p66
    %s68 = ssub.s32 %s8, %s15
    %p69 = scmp.eq.s32.totalorder %s68, 0
    %s71 = sadd.s32 %s70, 1
    %s72 = scalar_select %p69, %s70, %s71
    %p75 = pneg %p69
    %p76 = scmp.eq.s32.totalorder %s8, 1
    %p77 = por %p75, %p76
    %p78 = scmp.ne.s32.totalorder %s70, %s73
    %p79 = scmp.eq.s32.totalorder %s8, 0
    %p80 = por %p78, %p79
    %p81 = scmp.ne.s32.totalorder %s70, %s73
    %p82 = scmp.eq.s32.totalorder %s13, 1
    %p83 = por %p81, %p82
    %p84 = scmp.ne.s32.totalorder %s73, %s74
    %p85 = scmp.eq.s32.totalorder %s13, 0
    %p86 = por %p84, %p85
    %p87 = scmp.ne.s32.totalorder %s73, %s74
    %p88 = scmp.eq.s32.totalorder %s14, 1
    %p89 = por %p87, %p88
    %p91 = scmp.ne.s32.totalorder %s74, %s90
    %p92 = scmp.eq.s32.totalorder %s14, 0
    %p93 = por %p91, %p92
    %p94 = scmp.le.s32.totalorder 1, %s8
    %p95 = scmp.lt.s32.totalorder %s8, 3
    %p96 = pnand %p94, %p95
    %p97 = pneg %p96
    // Predicated region
    $region9: #{tpu_custom_call.1} parent=5 // pred_check
      _
    $region10: #{tpu_custom_call.1} parent=5 // pred_check_branch
      %99 = sbr.rel (%p96) target = $region12
    $region11: #{tpu_custom_call.1} parent=5 // pred_region
      %s100 = ssub.s32 %s8, 1
    $region12: #{tpu_custom_call.1} parent=5 // pred_fallthru
      _
    %p101 = scmp.lt.s32.totalorder %s8, 2
    // Predicated region
    $region13: #{tpu_custom_call.1} parent=5 // pred_check
      %p102 = pneg %p101
    $region14: #{tpu_custom_call.1} parent=5 // pred_check_branch
      %104 = sbr.rel (%p102) target = $region16
    $region15: #{tpu_custom_call.1} parent=5 // pred_region
      // Predicated region
      $region17: #{tpu_custom_call.1} parent=15 // pred_check
        %p105 = pneg %p28
      $region18: #{tpu_custom_call.1} parent=15 // pred_check_branch
        %107 = sbr.rel (%p105) target = $region20
      $region19: #{tpu_custom_call.1} parent=15 // pred_region
        %s108 = smul.u32 2, %s8
        %s109 = ssub.s32 3, %s108
        %p110 = scmp.lt.s32.totalorder %s109, 2
        %s111 = scalar_select %p110, %s109, 2
        %s112 = smul.u32 128, %s111
        %p113 = scmp.lt.s32.totalorder %s108, 2
        %s114 = scalar_select %p113, %s108, 2
        %s115 = smul.addr %s114, 8
        %s116 = scalar_lea.vmem %s0, %s115
        %s117 = smul.u32 2, %s8
        %s118 = ssub.s32 3, %s117
        %p119 = scmp.lt.s32.totalorder %s118, 2
        %s120 = scalar_select %p119, %s118, 2
        %s121 = smul.u32 128, %s120
      $region20: #{tpu_custom_call.1} parent=15 // pred_fallthru
        _
      // Predicated region
      $region21: #{tpu_custom_call.1} parent=15 // pred_check
        %p122 = pneg %p54
      $region22: #{tpu_custom_call.1} parent=15 // pred_check_branch
        %124 = sbr.rel (%p122) target = $region24
      $region23: #{tpu_custom_call.1} parent=15 // pred_region
        %s125 = smul.u32 2, %s8
        %s126 = ssub.s32 3, %s125
        %p127 = scmp.lt.s32.totalorder %s126, 2
        %s128 = scalar_select %p127, %s126, 2
        %s129 = smul.u32 128, %s128
        %p130 = scmp.lt.s32.totalorder %s125, 2
        %s131 = scalar_select %p130, %s125, 2
        %s132 = smul.addr %s131, 8
        %s133 = scalar_lea.vmem %s1, %s132
        %s134 = smul.u32 2, %s8
        %s135 = ssub.s32 3, %s134
        %p136 = scmp.lt.s32.totalorder %s135, 2
        %s137 = scalar_select %p136, %s135, 2
        %s138 = smul.u32 128, %s137
      $region24: #{tpu_custom_call.1} parent=15 // pred_fallthru
        _
    $region16: #{tpu_custom_call.1} parent=5 // pred_fallthru
      _
    %p139 = scmp.le.s32.totalorder 1, %s8
    %p140 = scmp.lt.s32.totalorder %s8, 3
    %p141 = pnand %p139, %p140
    %p142 = pneg %p141
    // Predicated region
    $region25: #{tpu_custom_call.1} parent=5 // pred_check
      _
    $region26: #{tpu_custom_call.1} parent=5 // pred_check_branch
      %144 = sbr.rel (%p141) target = $region28
    $region27: #{tpu_custom_call.1} parent=5 // pred_region
      %s145 = ssub.s32 %s8, 1
      %s146 = smul.u32 2, %s13
      %s147 = ssub.s32 3, %s146
      %p148 = scmp.lt.s32.totalorder %s147, 2
      %s149 = scalar_select %p148, %s147, 2
      %s150 = smul.u32 128, %s149
      %p151 = scmp.lt.s32.totalorder %s146, 2
      %s152 = scalar_select %p151, %s146, 2
      %s153 = smul.addr %s152, 8
      %s154 = scalar_lea.vmem %s0, %s153
      %p155 = pneg %p34
      %p156 = pneg %p31
      %s157 = smul.u32 2, %s13
      %s158 = ssub.s32 3, %s157
      %p159 = scmp.lt.s32.totalorder %s158, 2
      %s160 = scalar_select %p159, %s158, 2
      %s161 = smul.u32 128, %s160
      %p162 = scmp.lt.s32.totalorder %s157, 2
      %s163 = scalar_select %p162, %s157, 2
      %s164 = smul.addr %s163, 8
      %s165 = scalar_lea.vmem %s1, %s164
      %p166 = pneg %p60
      %p167 = pneg %p57
      %p168 = pneg %p86
      %p169 = pneg %p83
      %p170 = scmp.lt.s32.totalorder %s13, 1
      %s171 = scalar_select %p170, %s13, 1
      %s172 = scalar_lea.vmem %s2, %s171
      %s173 = smul.u32 2, %s13
      %s174 = ssub.s32 3, %s173
      %p175 = scmp.lt.s32.totalorder %s174, 2
      %s176 = scalar_select %p175, %s174, 2
      %s177 = smul.u32 128, %s176
      %p178 = scmp.lt.s32.totalorder %s173, 2
      %s179 = scalar_select %p178, %s173, 2
      %s180 = smul.addr %s179, 8
      %s181 = scalar_lea.vmem %s0, %s180
      %s182 = smul.u32 2, %s13
      %s183 = ssub.s32 3, %s182
      %p184 = scmp.lt.s32.totalorder %s183, 2
      %s185 = scalar_select %p184, %s183, 2
      %s186 = smul.u32 128, %s185
      %s187 = smul.u32 2, %s13
      %s188 = ssub.s32 3, %s187
      %p189 = scmp.lt.s32.totalorder %s188, 2
      %s190 = scalar_select %p189, %s188, 2
      %s191 = smul.u32 128, %s190
      %p192 = scmp.lt.s32.totalorder %s187, 2
      %s193 = scalar_select %p192, %s187, 2
      %s194 = smul.addr %s193, 8
      %s195 = scalar_lea.vmem %s1, %s194
      %s196 = smul.u32 2, %s13
      %s197 = ssub.s32 3, %s196
      %p198 = scmp.lt.s32.totalorder %s197, 2
      %s199 = scalar_select %p198, %s197, 2
      %s200 = smul.u32 128, %s199
      %p201 = scmp.lt.s32.totalorder %s13, 1
      %s202 = scalar_select %p201, %s13, 1
      %s203 = scalar_lea.vmem %s2, %s202
      %v204 = vld [vmem:[%s181] sm:$0xff]
      %v205 = vld [vmem:[%s181 + $0x8] sm:$0xff]
      %vm206 = vcmask 261120
      %v207 = vsel %vm206, %v204, -inf
      %208 = vmax.xlane.f32.xlu0 %v207
      %v209 = vpop.xlane.xlu0 %208
      %v210 = vsel %vm206, %v205, -inf
      %211 = vmax.xlane.f32.xlu0 %v210
      %v212 = vpop.xlane.xlu0 %211
      %v213 = vsub.f32 %v204, %v209
      %v214 = vsub.f32 %v205, %v212
      %v215 = vmul.f32 %v213, 1.442695
      %v216 = vpow.pop %v215
      %v217 = vmul.f32 %v214, 1.442695
      %v218 = vpow.pop %v217
      %v219 = vsel %vm206, %v216, 0.0
      %220 = vadd.xlane.f32.xlu0 %v219
      %v221 = vpop.xlane.xlu0 %220
      %v222 = vsel %vm206, %v218, 0.0
      %223 = vadd.xlane.f32.xlu0 %v222
      %v224 = vpop.xlane.xlu0 %223
      %v225 = vlog2.pop %v221
      %v226 = vmul.f32 %v225, 0.6931472
      %v227 = vlog2.pop %v224
      %v228 = vmul.f32 %v227, 0.6931472
      %v229 = vlaneseq
      %v230 = vand.u32 %v229, 127
      %v231 = vld [vmem:[%s195] sm:$0xff]
      %v232 = vld [vmem:[%s195 + $0x8] sm:$0xff]
      %233 = vset.pattern.permute.xlu0 0
      %234 = vperm.xlu0 %233, %v231
      %v235 = vpop.permute.xlu0 %234
      %236 = vset.pattern.permute.xlu0 0
      %237 = vperm.xlu0 %236, %v232
      %v238 = vpop.permute.xlu0 %237
      %vm239 = vcmp.eq.s32.totalorder %v230, %v235
      %vm240 = vcmp.eq.s32.totalorder %v230, %v238
      %v241 = vsel %vm239, 0.9, 0.0032258064
      %v242 = vsel %vm240, 0.9, 0.0032258064
      %v243 = vmul.f32 %v241, %v204
      %v244 = vmul.f32 %v242, %v205
      %v245 = vsel %vm206, %v243, 0.0
      %246 = vadd.xlane.f32.xlu0 %v245
      %v247 = vpop.xlane.xlu0 %246
      %v248 = vsel %vm206, %v244, 0.0
      %249 = vadd.xlane.f32.xlu0 %v248
      %v250 = vpop.xlane.xlu0 %249
      %v251 = vadd.f32 %v209, %v226
      %v252 = vadd.f32 %v212, %v228
      %v253 = vsub.f32 %v251, %v247
      %v254 = vsub.f32 %v252, %v250
      %v255 = vlaneseq
      %v256 = vshrl.u32 %v255, 7
      %v257 = vadd.s32 %v256, 8
      %s258 = smul.u32 %s13, 16
      %v259 = vstv %s258
      %v260 = vadd.s32 %v259, %v256
      %v261 = vadd.s32 %v259, %v257
      %vm262 = vcmp.lt.s32.totalorder %v260, 24
      %vm263 = vcmp.lt.s32.totalorder %v261, 24
      %v264 = vsel %vm262, %v253, 0.0
      %v265 = vsel %vm263, %v254, 0.0
      %vm266 = vcmask 7168
      %v267 = vsel %vm266, %v264, 0.0
      %v268 = vsel %vm266, %v265, 0.0
      %v269 = vadd.f32 %v267, %v268
      %270 = vadd.xlane.f32.xlu0 %v269
      %v271 = vpop.xlane.xlu0 %270
      %v272 = vrot.slane %v271, 4
      %v273 = vadd.f32 %v271, %v272
      %v274 = vrot.slane %v273, 2
      %v275 = vadd.f32 %v273, %v274
      %v276 = vrot.slane %v275, 1
      %v277 = vadd.f32 %v275, %v276
      %s278 = vtos %v277
      %v279 = vstv %s278
      %vm280 = vcmask 0
      %281 = vst.msk [vmem:[%s203] sm:$0x1] %vm280, %v279
      %p282 = scmp.lt.s32.totalorder %s13, 1
      %s283 = scalar_select %p282, %s13, 1
      %s284 = scalar_lea.vmem %s2, %s283
      // Predicated region
      $region29: #{tpu_custom_call.1} parent=27 // pred_check
        %p285 = pneg %p83
      $region30: #{tpu_custom_call.1} parent=27 // pred_check_branch
        %287 = sbr.rel (%p285) target = $region32
      $region31: #{tpu_custom_call.1} parent=27 // pred_region
        _
      $region32: #{tpu_custom_call.1} parent=27 // pred_fallthru
        _
    $region28: #{tpu_custom_call.1} parent=5 // pred_fallthru
      _
    %p288 = scmp.le.s32.totalorder 2, %s8
    // Predicated region
    $region33: #{tpu_custom_call.1} parent=5 // pred_check
      %p289 = pneg %p288
    $region34: #{tpu_custom_call.1} parent=5 // pred_check_branch
      %291 = sbr.rel (%p289) target = $region36
    $region35: #{tpu_custom_call.1} parent=5 // pred_region
      %s292 = ssub.s32 %s8, 2
      // Predicated region
      $region37: #{tpu_custom_call.1} parent=35 // pred_check
        %p293 = pneg %p89
      $region38: #{tpu_custom_call.1} parent=35 // pred_check_branch
        %295 = sbr.rel (%p293) target = $region40
      $region39: #{tpu_custom_call.1} parent=35 // pred_region
        %p296 = scmp.lt.s32.totalorder %s14, 1
        %s297 = scalar_select %p296, %s14, 1
        %s298 = scalar_lea.vmem %s2, %s297
      $region40: #{tpu_custom_call.1} parent=35 // pred_fallthru
        _
    $region36: #{tpu_custom_call.1} parent=5 // pred_fallthru
      _
  $region6: #{tpu_custom_call.1} parent=0 // loop_footer
    %s12 = sadd.s32 1, %s8
  $region7: #{tpu_custom_call.1} parent=0 // loop_footer_branch
    %7 = sbr.rel target = $region3
  $region8: #{tpu_custom_call.1} parent=0 // loop_exit
    _

</llo_original>
